<compile_context>
chip_gen: v7x
topology: tpu7x:2x2x1
jax: 0.10.0
libtpu: 0.0.40
codegen_flags: <defaults>
</compile_context>

<pallas_src>
import jax
import jax.numpy as jnp
from jax.experimental import pallas as pl
from jax.experimental.pallas import tpu as pltpu


_VMEM_BUDGET = 24 * 1024 * 1024   # working-set target (safe on v5e/v6e/v7x)
_VMEM_CAP = 48 * 1024 * 1024      # never request more scoped VMEM than this


def _round_up(x, m):
    return ((x + m - 1) // m) * m


def _cdiv(a, b):
    return (a + b - 1) // b


# ----------------------------------------------------------------------------
# Kernel: fused cls+reg linear head.
#   out block (tm, out_pad) is f32 and its index (i, 0) is constant along the
#   K grid axis, so it stays VMEM-resident and doubles as the accumulator.
#   Bias is added at k == 0 (addition commutes), so there is no epilogue pass.
# ----------------------------------------------------------------------------
def _rcnn_head_kernel(x_ref, w_ref, b_ref, out_ref):
    k = pl.program_id(1)
    partial = jnp.dot(x_ref[...], w_ref[...], preferred_element_type=jnp.float32)

    @pl.when(k == 0)
    def _():
        out_ref[...] = partial + b_ref[...]

    @pl.when(k != 0)
    def _():
        out_ref[...] += partial


# ----------------------------------------------------------------------------
# Tile planning.
# ----------------------------------------------------------------------------
def _plan_k(f, out_pad, budget):
    """Choose the K tile. Prefer a single full-F tile (W VMEM-resident)."""
    f128 = _round_up(f, 128)
    w_bytes_2buf = 2 * f128 * out_pad * 2          # conservative: double-buffered
    if w_bytes_2buf <= budget // 2:
        tk = f128                                  # W resident -> one K step
    else:
        tk = min(512, f128)                        # K-tiled fallback (huge F)
    f_pad = _round_up(f, tk)                       # pad F to a tk multiple
    return tk, f_pad


def _plan_m(n, tk, out_pad, budget):
    """Choose the row tile from the remaining VMEM budget."""
    n_al = _round_up(max(n, 1), 16)                # bf16 sublane multiple
    fixed = 2 * tk * out_pad * 2 + 2 * out_pad * 4       # W blocks + bias
    per_row = 2 * tk * 2 + 2 * out_pad * 4               # x + out (double-buffered)
    tm = max((budget - fixed) // per_row, 16)
    tm = min(tm, 1024)
    if tm >= 256:
        tm = (tm // 256) * 256                     # MXU-friendly on v6e/v7x
    else:
        tm = (tm // 16) * 16
    if n_al >= 512:
        # Keep >=2 row tiles so the "parallel" axis can shard across the two
        # TensorCores of a v7x chip (and megacore on v5e/v6e).
        tm = min(tm, _round_up(_cdiv(n_al, 2), 256))
    tm = max(min(tm, n_al), 16)
    n_pad = _round_up(n, tm)
    return tm, n_pad


# ----------------------------------------------------------------------------
# One-time parameter prep + jitted forward.
# ----------------------------------------------------------------------------
def make_rcnn_predictor(w_cls, b_cls, w_reg, b_reg):
    """w_cls: (num_classes, F), w_reg: (4*num_classes, F) in torch nn.Linear
    layout. Returns forward(x) -> (cls, reg) in float32."""
    nc, f = w_cls.shape
    nr = w_reg.shape[0]
    n_out = nc + nr
    out_pad = _round_up(n_out, 128)                # lane-dense output stores
    tk, f_pad = _plan_k(f, out_pad, _VMEM_BUDGET)

    # Fused weight (F_pad, OUT_PAD), bf16; padded rows/cols are zero.
    w_fused = jnp.concatenate([w_cls.T, w_reg.T], axis=1)                 # (F, n_out)
    w_fused = jnp.pad(w_fused, ((0, f_pad - f), (0, out_pad - n_out)))
    w_fused = w_fused.astype(jnp.bfloat16)
    # Fused bias (1, OUT_PAD) in f32 (added to the f32 accumulator).
    b_fused = jnp.concatenate([b_cls, b_reg]).reshape(1, n_out).astype(jnp.float32)
    b_fused = jnp.pad(b_fused, ((0, 0), (0, out_pad - n_out)))

    def forward(x):
        n = x.shape[0]
        x_flat = x.reshape(n, -1)                  # flatten(start_dim=1)
        assert x_flat.shape[1] == f, "feature dim mismatch with prepared params"

        tm, n_pad = _plan_m(n, tk, out_pad, _VMEM_BUDGET)
        x_p = jnp.pad(x_flat, ((0, n_pad - n), (0, f_pad - f))).astype(jnp.bfloat16)
        grid = (n_pad // tm, f_pad // tk)

        grid_spec = pltpu.PrefetchScalarGridSpec(
            num_scalar_prefetch=0,
            grid=grid,
            in_specs=[
                pl.BlockSpec((tm, tk), lambda i, k: (i, k)),        # x tile
                pl.BlockSpec((tk, out_pad), lambda i, k: (k, 0)),   # fused W
                pl.BlockSpec((1, out_pad), lambda i, k: (0, 0)),    # fused bias
            ],
            out_specs=pl.BlockSpec((tm, out_pad), lambda i, k: (i, 0)),
        )

        # Advisory cost hint (HBM-bandwidth bound). When the K axis collapses
        # to one step, W is read from HBM exactly once.
        flops = 2 * n_pad * f_pad * out_pad
        w_reads = 1 if grid[1] == 1 else grid[0]
        bytes_accessed = (n_pad * f_pad * 2
                          + w_reads * f_pad * out_pad * 2
                          + n_pad * out_pad * 4
                          + out_pad * 4)
        cost = pl.CostEstimate(flops=flops, transcendentals=0,
                               bytes_accessed=bytes_accessed)

        # Raise scoped VMEM only when the working set needs it; keep headroom
        # under v7x's 64 MiB physical VMEM (cap 48 MiB). 12 MiB threshold sits
        # safely under v5e's 16 MiB scoped default.
        vmem_needed = (2 * tm * tk * 2 + 2 * tk * out_pad * 2
                       + 2 * tm * out_pad * 4 + 2 * out_pad * 4)
        vmem_limit = None
        if vmem_needed > 12 * 1024 * 1024:
            vmem_limit = min(max(int(vmem_needed * 3 // 2), 32 * 1024 * 1024),
                             _VMEM_CAP)

        out_padded = pl.pallas_call(
            _rcnn_head_kernel,
            out_shape=jax.ShapeDtypeStruct((n_pad, out_pad), jnp.float32),
            grid_spec=grid_spec,
            compiler_params=pltpu.CompilerParams(
                dimension_semantics=("parallel", "arbitrary"),
                vmem_limit_bytes=vmem_limit),
            cost_estimate=cost,
        )(x_p, w_fused, b_fused)

        cls = out_padded[:n, :nc]
        reg = out_padded[:n, nc:nc + nr]
        return cls, reg

    return jax.jit(forward)


def rcnn_predictor(x, w_cls, b_cls, w_reg, b_reg):
    """Convenience one-shot wrapper (prep + forward). Prefer make_rcnn_predictor
    so the weight prep is paid once per model, not per call."""
    return make_rcnn_predictor(w_cls, b_cls, w_reg, b_reg)(x)


if __name__ == "__main__":
    # Small shapes consistent with the module: N=2, C=4, H=W=16
    # -> F = 4*16*16 = 1024, num_classes = 4.
    N, C, H, W = 2, 4, 16, 16
    F_IN = C * H * W
    NUM_CLASSES = 4

    key = jax.random.PRNGKey(0)
    kx, kwc, kbc, kwr, kbr = jax.random.split(key, 5)

    x = jax.random.normal(kx, (N, C, H, W), dtype=jnp.float32)
    # Deterministic "nn.Linear"-style params (torch layout: (out, in)).
    bound = 1.0 / (F_IN ** 0.5)
    w_cls = jax.random.uniform(kwc, (NUM_CLASSES, F_IN), jnp.float32, -bound, bound)
    b_cls = jax.random.uniform(kbc, (NUM_CLASSES,), jnp.float32, -bound, bound)
    w_reg = jax.random.uniform(kwr, (NUM_CLASSES * 4, F_IN), jnp.float32, -bound, bound)
    b_reg = jax.random.uniform(kbr, (NUM_CLASSES * 4,), jnp.float32, -bound, bound)

    # One-time prep, then forward (prep hoisted out of the call path).
    forward = make_rcnn_predictor(w_cls, b_cls, w_reg, b_reg)
    cls_out, reg_out = forward(x)
    jax.block_until_ready((cls_out, reg_out))

    assert cls_out.shape == (N, NUM_CLASSES)
    assert reg_out.shape == (N, NUM_CLASSES * 4)

    x_flat = x.reshape(N, -1)

    # Reference 1: same bf16-operand / f32-accumulate numerics (tight check).
    xb = x_flat.astype(jnp.bfloat16)
    cls_ref_bf = jnp.dot(xb, w_cls.T.astype(jnp.bfloat16),
                         preferred_element_type=jnp.float32) + b_cls
    reg_ref_bf = jnp.dot(xb, w_reg.T.astype(jnp.bfloat16),
                         preferred_element_type=jnp.float32) + b_reg
    assert jnp.allclose(cls_out, cls_ref_bf, atol=2e-3, rtol=2e-3)
    assert jnp.allclose(reg_out, reg_ref_bf, atol=2e-3, rtol=2e-3)

    # Reference 2: full f32 (loose check -- bf16 operands lose ~8 mantissa bits).
    # TODO(synk): for exact f32 nn.Linear parity, keep f32 operands (slower MXU path).
    cls_ref = x_flat @ w_cls.T + b_cls
    reg_ref = x_flat @ w_reg.T + b_reg
    assert jnp.allclose(cls_out, cls_ref, atol=5e-2, rtol=5e-2)
    assert jnp.allclose(reg_out, reg_ref, atol=5e-2, rtol=5e-2)

    print("KERNEL_OK")
</pallas_src>

<mosaic_0001>
module attributes {stable_mosaic.version = 11 : i64} {
  func.func @_rcnn_head_kernel(%arg0: i32, %arg1: i32, %arg2: memref<16x1024xbf16, #tpu.memory_space<vmem>>, %arg3: memref<1024x128xbf16, #tpu.memory_space<vmem>>, %arg4: memref<1x128xf32, #tpu.memory_space<vmem>>, %arg5: memref<16x128xf32, #tpu.memory_space<vmem>>) attributes {dimension_semantics = [#tpu.dimension_semantics<parallel>, #tpu.dimension_semantics<arbitrary>], iteration_bounds = array<i64: 1, 1>, scalar_prefetch = 0 : i64, scratch_operands = 0 : i64, tpu.core_type = #tpu.core_type<tc>, window_params = [{transform_indices = @transform_0, window_bounds = array<i64: 16, 1024>}, {transform_indices = @transform_1, window_bounds = array<i64: 1024, 128>}, {pipeline_mode = #tpu.pipeline_mode<synchronous>, transform_indices = @transform_2, window_bounds = array<i64: 1, 128>}, {transform_indices = @transform_3, window_bounds = array<i64: 16, 128>}]} {
    %c0 = arith.constant 0 : index
    %c0_0 = arith.constant 0 : index
    %0 = vector.load %arg2[%c0, %c0_0] : memref<16x1024xbf16, #tpu.memory_space<vmem>>, vector<16x1024xbf16>
    %c0_1 = arith.constant 0 : index
    %c0_2 = arith.constant 0 : index
    %1 = vector.load %arg3[%c0_1, %c0_2] : memref<1024x128xbf16, #tpu.memory_space<vmem>>, vector<1024x128xbf16>
    %cst = arith.constant dense<0.000000e+00> : vector<16x128xf32>
    %2 = tpu.matmul %0, %1, %cst {dimension_numbers = #tpu.dot_dimension_numbers<[1], [0], [0], [1], [0, 0, 1, 1], [], []>} : vector<16x1024xbf16>, vector<1024x128xbf16>, vector<16x128xf32> -> vector<16x128xf32>
    %c0_i32 = arith.constant 0 : i32
    %3 = arith.cmpi eq, %arg1, %c0_i32 : i32
    %4 = arith.extui %3 : i1 to i32
    %c0_i32_3 = arith.constant 0 : i32
    %5 = arith.cmpi ne, %4, %c0_i32_3 : i32
    scf.if %5 {
      %c0_6 = arith.constant 0 : index
      %c0_7 = arith.constant 0 : index
      %9 = vector.load %arg4[%c0_6, %c0_7] : memref<1x128xf32, #tpu.memory_space<vmem>>, vector<1x128xf32>
      %10 = vector.broadcast %9 : vector<1x128xf32> to vector<16x128xf32>
      %11 = arith.addf %2, %10 : vector<16x128xf32>
      %c0_8 = arith.constant 0 : index
      %c0_9 = arith.constant 0 : index
      %12 = vector.load %arg5[%c0_8, %c0_9] : memref<16x128xf32, #tpu.memory_space<vmem>>, vector<16x128xf32>
      tpu.vector_store %arg5[%c0_8, %c0_9], %11 {strides = array<i32>} : memref<16x128xf32, #tpu.memory_space<vmem>>, vector<16x128xf32>,
    } else {
    }
    %c0_i32_4 = arith.constant 0 : i32
    %6 = arith.cmpi ne, %arg1, %c0_i32_4 : i32
    %7 = arith.extui %6 : i1 to i32
    %c0_i32_5 = arith.constant 0 : i32
    %8 = arith.cmpi ne, %7, %c0_i32_5 : i32
    scf.if %8 {
      %c0_6 = arith.constant 0 : index
      %c0_7 = arith.constant 0 : index
      %9 = vector.load %arg5[%c0_6, %c0_7] : memref<16x128xf32, #tpu.memory_space<vmem>>, vector<16x128xf32>
      %10 = arith.addf %9, %2 : vector<16x128xf32>
      %c0_8 = arith.constant 0 : index
      %c0_9 = arith.constant 0 : index
      %11 = vector.load %arg5[%c0_8, %c0_9] : memref<16x128xf32, #tpu.memory_space<vmem>>, vector<16x128xf32>
      tpu.vector_store %arg5[%c0_8, %c0_9], %10 {strides = array<i32>} : memref<16x128xf32, #tpu.memory_space<vmem>>, vector<16x128xf32>,
    } else {
    }
    return
  }
  func.func @transform_0(%arg0: i32, %arg1: i32) -> (i32, i32) {
    %c0_i32 = arith.constant 0 : i32
    return %arg0, %arg1 : i32, i32
  }
  func.func @transform_1(%arg0: i32, %arg1: i32) -> (i32, i32) {
    %c0_i32 = arith.constant 0 : i32
    %c0_i32_0 = arith.constant 0 : i32
    return %arg1, %c0_i32 : i32, i32
  }
  func.func @transform_2(%arg0: i32, %arg1: i32) -> (i32, i32) {
    %c0_i32 = arith.constant 0 : i32
    %c0_i32_0 = arith.constant 0 : i32
    %c0_i32_1 = arith.constant 0 : i32
    return %c0_i32, %c0_i32_0 : i32, i32
  }
  func.func @transform_3(%arg0: i32, %arg1: i32) -> (i32, i32) {
    %c0_i32 = arith.constant 0 : i32
    %c0_i32_0 = arith.constant 0 : i32
    return %arg0, %c0_i32 : i32, i32
  }
}

</mosaic_0001>

<llo_original>
// kernel: forward.1
$region0: #{forward.1}
  #allocation0 [shape = 'u32[]', space=smem, size = 0x4, offset = 0x4, fixed_abs, tag = 'smem constant byte address 0x4 - core index']
  #allocation1 [shape = 'u32[144,128]{1,0:T(1,128)}', space=vmem, size = 0x12000, scoped, tag = 'internal scratch']
  %s0 = inlined_call_operand.vmem [shape: bf16[16,1024], index: 0, kind: input, shape index: {}]
  %s1 = inlined_call_operand.hbm [shape: bf16[1024,128], index: 1, kind: input, shape index: {}]
  %s2 = inlined_call_operand.vmem [shape: f32[1,128], index: 2, kind: input, shape index: {}]
  %s3 = inlined_call_operand.vmem [shape: f32[16,128], index: 3, kind: output, shape index: {}]
  %s4 = sld [smem:[#allocation0]]
  $region34: #{forward.1} parent=0
    _
  %s6 = ssub.s32 1, %s4
  %s7 = scalar_select 0, %s6, %s4
  $region1: #{forward.1} parent=0
    #allocation2 [shape = 'u8[262144]{0}', space=vmem, size = 0x40000, scoped, tag = 'input window, operand 1, single buffered']
    #allocation3 [shape = 's32[1]{0}', space=sflag, size = 0x4, scoped, tag = 'scoped memory for forward.1']
    %8 = vsyncpa [#allocation3], 0
    // Predicated region
    $region2: #{forward.1} parent=1 // pred_check
      _
    $region3: #{forward.1} parent=1 // pred_check_branch
      %10 = sbr.rel (0) target = $region5
    $region4: #{forward.1} parent=1 // pred_region
      _
    $region5: #{forward.1} parent=1 // pred_fallthru
      _
    // Predicated region
    $region6: #{forward.1} parent=1 // pred_check
      _
    $region7: #{forward.1} parent=1 // pred_check_branch
      %12 = sbr.rel (0) target = $region9
    $region8: #{forward.1} parent=1 // pred_region
      %s14 = ssub.s32 8192, 8192
      %15 = vsyncadd [#allocation3], %s14
      %s16 = sshll.u32 [#allocation2], 4
      %s17 = int_to_ptr.vmem [resolvable:$true] %s16
      %22 = dma.hbm_to_vmem [thread:$0]  %s1, 8192, %s17, [#allocation3], 64, 64, 4
    $region9: #{forward.1} parent=1 // pred_fallthru
      _
    // Predicated region
    $region10: #{forward.1} parent=1 // pred_check
      _
    $region11: #{forward.1} parent=1 // pred_check_branch
      %24 = sbr.rel (0) target = $region13
    $region12: #{forward.1} parent=1 // pred_region
      _
    $region13: #{forward.1} parent=1 // pred_fallthru
      _
    // Predicated region
    $region14: #{forward.1} parent=1 // pred_check
      _
    $region15: #{forward.1} parent=1 // pred_check_branch
      %26 = sbr.rel (0) target = $region17
    $region16: #{forward.1} parent=1 // pred_region
      %27 = dma.done [#allocation3], 8192
    $region17: #{forward.1} parent=1 // pred_fallthru
      _
    %v29 = vld [vmem:[%s0] sm:$0xff]
    %v30 = vld [vmem:[%s0 + $0x8] sm:$0xff]
    %v31 = vld [vmem:[%s0 + $0x10] sm:$0xff]
    %v32 = vld [vmem:[%s0 + $0x18] sm:$0xff]
    %v33 = vld [vmem:[%s0 + $0x20] sm:$0xff]
    %v34 = vld [vmem:[%s0 + $0x28] sm:$0xff]
    %v35 = vld [vmem:[%s0 + $0x30] sm:$0xff]
    %v36 = vld [vmem:[%s0 + $0x38] sm:$0xff]
    %v37 = vld [vmem:[#allocation2] sm:$0xf]
    %v38 = vld [vmem:[#allocation2 + $0x4] sm:$0xf]
    %v39 = vld [vmem:[#allocation2 + $0x8] sm:$0xf]
    %v40 = vld [vmem:[#allocation2 + $0xc] sm:$0xf]
    %v41 = vld [vmem:[#allocation2 + $0x10] sm:$0xf]
    %v42 = vld [vmem:[#allocation2 + $0x14] sm:$0xf]
    %v43 = vld [vmem:[#allocation2 + $0x18] sm:$0xf]
    %v44 = vld [vmem:[#allocation2 + $0x1c] sm:$0xf]
    %v45 = vld [vmem:[#allocation2 + $0x20] sm:$0xf]
    %v46 = vld [vmem:[#allocation2 + $0x24] sm:$0xf]
    %v47 = vld [vmem:[#allocation2 + $0x28] sm:$0xf]
    %v48 = vld [vmem:[#allocation2 + $0x2c] sm:$0xf]
    %v49 = vld [vmem:[#allocation2 + $0x30] sm:$0xf]
    %v50 = vld [vmem:[#allocation2 + $0x34] sm:$0xf]
    %v51 = vld [vmem:[#allocation2 + $0x38] sm:$0xf]
    %v52 = vld [vmem:[#allocation2 + $0x3c] sm:$0xf]
    %v53 = vld [vmem:[#allocation2 + $0x40] sm:$0xf]
    %v54 = vld [vmem:[#allocation2 + $0x44] sm:$0xf]
    %v55 = vld [vmem:[#allocation2 + $0x48] sm:$0xf]
    %v56 = vld [vmem:[#allocation2 + $0x4c] sm:$0xf]
    %v57 = vld [vmem:[#allocation2 + $0x50] sm:$0xf]
    %v58 = vld [vmem:[#allocation2 + $0x54] sm:$0xf]
    %v59 = vld [vmem:[#allocation2 + $0x58] sm:$0xf]
    %v60 = vld [vmem:[#allocation2 + $0x5c] sm:$0xf]
    %v61 = vld [vmem:[#allocation2 + $0x60] sm:$0xf]
    %v62 = vld [vmem:[#allocation2 + $0x64] sm:$0xf]
    %v63 = vld [vmem:[#allocation2 + $0x68] sm:$0xf]
    %v64 = vld [vmem:[#allocation2 + $0x6c] sm:$0xf]
    %v65 = vld [vmem:[#allocation2 + $0x70] sm:$0xf]
    %v66 = vld [vmem:[#allocation2 + $0x74] sm:$0xf]
    %v67 = vld [vmem:[#allocation2 + $0x78] sm:$0xf]
    %v68 = vld [vmem:[#allocation2 + $0x7c] sm:$0xf]
    %v69 = vld [vmem:[#allocation2 + $0x80] sm:$0xf]
    %v70 = vld [vmem:[#allocation2 + $0x84] sm:$0xf]
    %v71 = vld [vmem:[#allocation2 + $0x88] sm:$0xf]
    %v72 = vld [vmem:[#allocation2 + $0x8c] sm:$0xf]
    %v73 = vld [vmem:[#allocation2 + $0x90] sm:$0xf]
    %v74 = vld [vmem:[#allocation2 + $0x94] sm:$0xf]
    %v75 = vld [vmem:[#allocation2 + $0x98] sm:$0xf]
    %v76 = vld [vmem:[#allocation2 + $0x9c] sm:$0xf]
    %v77 = vld [vmem:[#allocation2 + $0xa0] sm:$0xf]
    %v78 = vld [vmem:[#allocation2 + $0xa4] sm:$0xf]
    %v79 = vld [vmem:[#allocation2 + $0xa8] sm:$0xf]
    %v80 = vld [vmem:[#allocation2 + $0xac] sm:$0xf]
    %v81 = vld [vmem:[#allocation2 + $0xb0] sm:$0xf]
    %v82 = vld [vmem:[#allocation2 + $0xb4] sm:$0xf]
    %v83 = vld [vmem:[#allocation2 + $0xb8] sm:$0xf]
    %v84 = vld [vmem:[#allocation2 + $0xbc] sm:$0xf]
    %v85 = vld [vmem:[#allocation2 + $0xc0] sm:$0xf]
    %v86 = vld [vmem:[#allocation2 + $0xc4] sm:$0xf]
    %v87 = vld [vmem:[#allocation2 + $0xc8] sm:$0xf]
    %v88 = vld [vmem:[#allocation2 + $0xcc] sm:$0xf]
    %v89 = vld [vmem:[#allocation2 + $0xd0] sm:$0xf]
    %v90 = vld [vmem:[#allocation2 + $0xd4] sm:$0xf]
    %v91 = vld [vmem:[#allocation2 + $0xd8] sm:$0xf]
    %v92 = vld [vmem:[#allocation2 + $0xdc] sm:$0xf]
    %v93 = vld [vmem:[#allocation2 + $0xe0] sm:$0xf]
    %v94 = vld [vmem:[#allocation2 + $0xe4] sm:$0xf]
    %v95 = vld [vmem:[#allocation2 + $0xe8] sm:$0xf]
    %v96 = vld [vmem:[#allocation2 + $0xec] sm:$0xf]
    %v97 = vld [vmem:[#allocation2 + $0xf0] sm:$0xf]
    %v98 = vld [vmem:[#allocation2 + $0xf4] sm:$0xf]
    %v99 = vld [vmem:[#allocation2 + $0xf8] sm:$0xf]
    %v100 = vld [vmem:[#allocation2 + $0xfc] sm:$0xf]
    %v101 = vld [vmem:[#allocation2 + $0x100] sm:$0xf]
    %v102 = vld [vmem:[#allocation2 + $0x104] sm:$0xf]
    %v103 = vld [vmem:[#allocation2 + $0x108] sm:$0xf]
    %v104 = vld [vmem:[#allocation2 + $0x10c] sm:$0xf]
    %v105 = vld [vmem:[#allocation2 + $0x110] sm:$0xf]
    %v106 = vld [vmem:[#allocation2 + $0x114] sm:$0xf]
    %v107 = vld [vmem:[#allocation2 + $0x118] sm:$0xf]
    %v108 = vld [vmem:[#allocation2 + $0x11c] sm:$0xf]
    %v109 = vld [vmem:[#allocation2 + $0x120] sm:$0xf]
    %v110 = vld [vmem:[#allocation2 + $0x124] sm:$0xf]
    %v111 = vld [vmem:[#allocation2 + $0x128] sm:$0xf]
    %v112 = vld [vmem:[#allocation2 + $0x12c] sm:$0xf]
    %v113 = vld [vmem:[#allocation2 + $0x130] sm:$0xf]
    %v114 = vld [vmem:[#allocation2 + $0x134] sm:$0xf]
    %v115 = vld [vmem:[#allocation2 + $0x138] sm:$0xf]
    %v116 = vld [vmem:[#allocation2 + $0x13c] sm:$0xf]
    %v117 = vld [vmem:[#allocation2 + $0x140] sm:$0xf]
    %v118 = vld [vmem:[#allocation2 + $0x144] sm:$0xf]
    %v119 = vld [vmem:[#allocation2 + $0x148] sm:$0xf]
    %v120 = vld [vmem:[#allocation2 + $0x14c] sm:$0xf]
    %v121 = vld [vmem:[#allocation2 + $0x150] sm:$0xf]
    %v122 = vld [vmem:[#allocation2 + $0x154] sm:$0xf]
    %v123 = vld [vmem:[#allocation2 + $0x158] sm:$0xf]
    %v124 = vld [vmem:[#allocation2 + $0x15c] sm:$0xf]
    %v125 = vld [vmem:[#allocation2 + $0x160] sm:$0xf]
    %v126 = vld [vmem:[#allocation2 + $0x164] sm:$0xf]
    %v127 = vld [vmem:[#allocation2 + $0x168] sm:$0xf]
    %v128 = vld [vmem:[#allocation2 + $0x16c] sm:$0xf]
    %v129 = vld [vmem:[#allocation2 + $0x170] sm:$0xf]
    %v130 = vld [vmem:[#allocation2 + $0x174] sm:$0xf]
    %v131 = vld [vmem:[#allocation2 + $0x178] sm:$0xf]
    %v132 = vld [vmem:[#allocation2 + $0x17c] sm:$0xf]
    %v133 = vld [vmem:[#allocation2 + $0x180] sm:$0xf]
    %v134 = vld [vmem:[#allocation2 + $0x184] sm:$0xf]
    %v135 = vld [vmem:[#allocation2 + $0x188] sm:$0xf]
    %v136 = vld [vmem:[#allocation2 + $0x18c] sm:$0xf]
    %v137 = vld [vmem:[#allocation2 + $0x190] sm:$0xf]
    %v138 = vld [vmem:[#allocation2 + $0x194] sm:$0xf]
    %v139 = vld [vmem:[#allocation2 + $0x198] sm:$0xf]
    %v140 = vld [vmem:[#allocation2 + $0x19c] sm:$0xf]
    %v141 = vld [vmem:[#allocation2 + $0x1a0] sm:$0xf]
    %v142 = vld [vmem:[#allocation2 + $0x1a4] sm:$0xf]
    %v143 = vld [vmem:[#allocation2 + $0x1a8] sm:$0xf]
    %v144 = vld [vmem:[#allocation2 + $0x1ac] sm:$0xf]
    %v145 = vld [vmem:[#allocation2 + $0x1b0] sm:$0xf]
    %v146 = vld [vmem:[#allocation2 + $0x1b4] sm:$0xf]
    %v147 = vld [vmem:[#allocation2 + $0x1b8] sm:$0xf]
    %v148 = vld [vmem:[#allocation2 + $0x1bc] sm:$0xf]
    %v149 = vld [vmem:[#allocation2 + $0x1c0] sm:$0xf]
    %v150 = vld [vmem:[#allocation2 + $0x1c4] sm:$0xf]
    %v151 = vld [vmem:[#allocation2 + $0x1c8] sm:$0xf]
    %v152 = vld [vmem:[#allocation2 + $0x1cc] sm:$0xf]
    %v153 = vld [vmem:[#allocation2 + $0x1d0] sm:$0xf]
    %v154 = vld [vmem:[#allocation2 + $0x1d4] sm:$0xf]
    %v155 = vld [vmem:[#allocation2 + $0x1d8] sm:$0xf]
    %v156 = vld [vmem:[#allocation2 + $0x1dc] sm:$0xf]
    %v157 = vld [vmem:[#allocation2 + $0x1e0] sm:$0xf]
    %v158 = vld [vmem:[#allocation2 + $0x1e4] sm:$0xf]
    %v159 = vld [vmem:[#allocation2 + $0x1e8] sm:$0xf]
    %v160 = vld [vmem:[#allocation2 + $0x1ec] sm:$0xf]
    %v161 = vld [vmem:[#allocation2 + $0x1f0] sm:$0xf]
    %v162 = vld [vmem:[#allocation2 + $0x1f4] sm:$0xf]
    %v163 = vld [vmem:[#allocation2 + $0x1f8] sm:$0xf]
    %v164 = vld [vmem:[#allocation2 + $0x1fc] sm:$0xf]
    %v173 = vunpack.c.l.b16 %v29
    %v174 = vunpack.c.h.b16 %v29
    %v175 = vunpack.c.l.b16 %v30
    %v176 = vunpack.c.h.b16 %v30
    %v177 = vunpack.c.l.b16 %v31
    %v178 = vunpack.c.h.b16 %v31
    %v179 = vunpack.c.l.b16 %v32
    %v180 = vunpack.c.h.b16 %v32
    %v181 = vunpack.c.l.b16 %v33
    %v182 = vunpack.c.h.b16 %v33
    %v183 = vunpack.c.l.b16 %v34
    %v184 = vunpack.c.h.b16 %v34
    %v185 = vunpack.c.l.b16 %v35
    %v186 = vunpack.c.h.b16 %v35
    %v187 = vunpack.c.l.b16 %v36
    %v188 = vunpack.c.h.b16 %v36
    %v189 = vpack.c.b16 %v181, %v173
    %v190 = vpack.c.b16 %v182, %v174
    %v191 = vpack.c.b16 %v183, %v175
    %v192 = vpack.c.b16 %v184, %v176
    %v193 = vpack.c.b16 %v185, %v177
    %v194 = vpack.c.b16 %v186, %v178
    %v195 = vpack.c.b16 %v187, %v179
    %v196 = vpack.c.b16 %v188, %v180
    %v333 = vunpack.c.l.b16 %v37
    %v334 = vunpack.c.l.b16 %v38
    %v335 = vunpack.c.l.b16 %v39
    %v336 = vunpack.c.l.b16 %v40
    %v337 = vunpack.c.l.b16 %v41
    %v338 = vunpack.c.l.b16 %v42
    %v339 = vunpack.c.l.b16 %v43
    %v340 = vunpack.c.l.b16 %v44
    %v341 = vunpack.c.l.b16 %v45
    %v342 = vunpack.c.l.b16 %v46
    %v343 = vunpack.c.l.b16 %v47
    %v344 = vunpack.c.l.b16 %v48
    %v345 = vunpack.c.l.b16 %v49
    %v346 = vunpack.c.l.b16 %v50
    %v347 = vunpack.c.l.b16 %v51
    %v348 = vunpack.c.l.b16 %v52
    %v349 = vunpack.c.l.b16 %v53
    %v350 = vunpack.c.l.b16 %v54
    %v351 = vunpack.c.l.b16 %v55
    %v352 = vunpack.c.l.b16 %v56
    %v353 = vunpack.c.l.b16 %v57
    %v354 = vunpack.c.l.b16 %v58
    %v355 = vunpack.c.l.b16 %v59
    %v356 = vunpack.c.l.b16 %v60
    %v357 = vunpack.c.l.b16 %v61
    %v358 = vunpack.c.l.b16 %v62
    %v359 = vunpack.c.l.b16 %v63
    %v360 = vunpack.c.l.b16 %v64
    %v361 = vunpack.c.l.b16 %v65
    %v362 = vunpack.c.l.b16 %v66
    %v363 = vunpack.c.l.b16 %v67
    %v364 = vunpack.c.l.b16 %v68
    %v365 = vunpack.c.l.b16 %v69
    %v366 = vunpack.c.l.b16 %v70
    %v367 = vunpack.c.l.b16 %v71
    %v368 = vunpack.c.l.b16 %v72
    %v369 = vunpack.c.l.b16 %v73
    %v370 = vunpack.c.l.b16 %v74
    %v371 = vunpack.c.l.b16 %v75
    %v372 = vunpack.c.l.b16 %v76
    %v373 = vunpack.c.l.b16 %v77
    %v374 = vunpack.c.l.b16 %v78
    %v375 = vunpack.c.l.b16 %v79
    %v376 = vunpack.c.l.b16 %v80
    %v377 = vunpack.c.l.b16 %v81
    %v378 = vunpack.c.l.b16 %v82
    %v379 = vunpack.c.l.b16 %v83
    %v380 = vunpack.c.l.b16 %v84
    %v381 = vunpack.c.l.b16 %v85
    %v382 = vunpack.c.l.b16 %v86
    %v383 = vunpack.c.l.b16 %v87
    %v384 = vunpack.c.l.b16 %v88
    %v385 = vunpack.c.l.b16 %v89
    %v386 = vunpack.c.l.b16 %v90
    %v387 = vunpack.c.l.b16 %v91
    %v388 = vunpack.c.l.b16 %v92
    %v389 = vunpack.c.l.b16 %v93
    %v390 = vunpack.c.l.b16 %v94
    %v391 = vunpack.c.l.b16 %v95
    %v392 = vunpack.c.l.b16 %v96
    %v393 = vunpack.c.l.b16 %v97
    %v394 = vunpack.c.l.b16 %v98
    %v395 = vunpack.c.l.b16 %v99
    %v396 = vunpack.c.l.b16 %v100
    %v397 = vunpack.c.l.b16 %v101
    %v398 = vunpack.c.l.b16 %v102
    %v399 = vunpack.c.l.b16 %v103
    %v400 = vunpack.c.l.b16 %v104
    %v401 = vunpack.c.l.b16 %v105
    %v402 = vunpack.c.l.b16 %v106
    %v403 = vunpack.c.l.b16 %v107
    %v404 = vunpack.c.l.b16 %v108
    %v405 = vunpack.c.l.b16 %v109
    %v406 = vunpack.c.l.b16 %v110
    %v407 = vunpack.c.l.b16 %v111
    %v408 = vunpack.c.l.b16 %v112
    %v409 = vunpack.c.l.b16 %v113
    %v410 = vunpack.c.l.b16 %v114
    %v411 = vunpack.c.l.b16 %v115
    %v412 = vunpack.c.l.b16 %v116
    %v413 = vunpack.c.l.b16 %v117
    %v414 = vunpack.c.l.b16 %v118
    %v415 = vunpack.c.l.b16 %v119
    %v416 = vunpack.c.l.b16 %v120
    %v417 = vunpack.c.l.b16 %v121
    %v418 = vunpack.c.l.b16 %v122
    %v419 = vunpack.c.l.b16 %v123
    %v420 = vunpack.c.l.b16 %v124
    %v421 = vunpack.c.l.b16 %v125
    %v422 = vunpack.c.l.b16 %v126
    %v423 = vunpack.c.l.b16 %v127
    %v424 = vunpack.c.l.b16 %v128
    %v425 = vunpack.c.l.b16 %v129
    %v426 = vunpack.c.l.b16 %v130
    %v427 = vunpack.c.l.b16 %v131
    %v428 = vunpack.c.l.b16 %v132
    %v429 = vunpack.c.l.b16 %v133
    %v430 = vunpack.c.l.b16 %v134
    %v431 = vunpack.c.l.b16 %v135
    %v432 = vunpack.c.l.b16 %v136
    %v433 = vunpack.c.l.b16 %v137
    %v434 = vunpack.c.l.b16 %v138
    %v435 = vunpack.c.l.b16 %v139
    %v436 = vunpack.c.l.b16 %v140
    %v437 = vunpack.c.l.b16 %v141
    %v438 = vunpack.c.l.b16 %v142
    %v439 = vunpack.c.l.b16 %v143
    %v440 = vunpack.c.l.b16 %v144
    %v441 = vunpack.c.l.b16 %v145
    %v442 = vunpack.c.l.b16 %v146
    %v443 = vunpack.c.l.b16 %v147
    %v444 = vunpack.c.l.b16 %v148
    %v445 = vunpack.c.l.b16 %v149
    %v446 = vunpack.c.l.b16 %v150
    %v447 = vunpack.c.l.b16 %v151
    %v448 = vunpack.c.l.b16 %v152
    %v449 = vunpack.c.l.b16 %v153
    %v450 = vunpack.c.l.b16 %v154
    %v451 = vunpack.c.l.b16 %v155
    %v452 = vunpack.c.l.b16 %v156
    %v453 = vunpack.c.l.b16 %v157
    %v454 = vunpack.c.l.b16 %v158
    %v455 = vunpack.c.l.b16 %v159
    %v456 = vunpack.c.l.b16 %v160
    %v457 = vunpack.c.l.b16 %v161
    %v458 = vunpack.c.l.b16 %v162
    %v459 = vunpack.c.l.b16 %v163
    %v460 = vunpack.c.l.b16 %v164
    %v461 = vpack.c.b16 %v334, %v333
    %v462 = vpack.c.b16 %v336, %v335
    %v463 = vpack.c.b16 %v338, %v337
    %v464 = vpack.c.b16 %v340, %v339
    %v465 = vpack.c.b16 %v342, %v341
    %v466 = vpack.c.b16 %v344, %v343
    %v467 = vpack.c.b16 %v346, %v345
    %v468 = vpack.c.b16 %v348, %v347
    %v469 = vpack.c.b16 %v350, %v349
    %v470 = vpack.c.b16 %v352, %v351
    %v471 = vpack.c.b16 %v354, %v353
    %v472 = vpack.c.b16 %v356, %v355
    %v473 = vpack.c.b16 %v358, %v357
    %v474 = vpack.c.b16 %v360, %v359
    %v475 = vpack.c.b16 %v362, %v361
    %v476 = vpack.c.b16 %v364, %v363
    %v477 = vpack.c.b16 %v366, %v365
    %v478 = vpack.c.b16 %v368, %v367
    %v479 = vpack.c.b16 %v370, %v369
    %v480 = vpack.c.b16 %v372, %v371
    %v481 = vpack.c.b16 %v374, %v373
    %v482 = vpack.c.b16 %v376, %v375
    %v483 = vpack.c.b16 %v378, %v377
    %v484 = vpack.c.b16 %v380, %v379
    %v485 = vpack.c.b16 %v382, %v381
    %v486 = vpack.c.b16 %v384, %v383
    %v487 = vpack.c.b16 %v386, %v385
    %v488 = vpack.c.b16 %v388, %v387
    %v489 = vpack.c.b16 %v390, %v389
    %v490 = vpack.c.b16 %v392, %v391
    %v491 = vpack.c.b16 %v394, %v393
    %v492 = vpack.c.b16 %v396, %v395
    %v493 = vpack.c.b16 %v398, %v397
    %v494 = vpack.c.b16 %v400, %v399
    %v495 = vpack.c.b16 %v402, %v401
    %v496 = vpack.c.b16 %v404, %v403
    %v497 = vpack.c.b16 %v406, %v405
    %v498 = vpack.c.b16 %v408, %v407
    %v499 = vpack.c.b16 %v410, %v409
    %v500 = vpack.c.b16 %v412, %v411
    %v501 = vpack.c.b16 %v414, %v413
    %v502 = vpack.c.b16 %v416, %v415
    %v503 = vpack.c.b16 %v418, %v417
    %v504 = vpack.c.b16 %v420, %v419
    %v505 = vpack.c.b16 %v422, %v421
    %v506 = vpack.c.b16 %v424, %v423
    %v507 = vpack.c.b16 %v426, %v425
    %v508 = vpack.c.b16 %v428, %v427
    %v509 = vpack.c.b16 %v430, %v429
    %v510 = vpack.c.b16 %v432, %v431
    %v511 = vpack.c.b16 %v434, %v433
    %v512 = vpack.c.b16 %v436, %v435
    %v513 = vpack.c.b16 %v438, %v437
    %v514 = vpack.c.b16 %v440, %v439
    %v515 = vpack.c.b16 %v442, %v441
    %v516 = vpack.c.b16 %v444, %v443
    %v517 = vpack.c.b16 %v446, %v445
    %v518 = vpack.c.b16 %v448, %v447
    %v519 = vpack.c.b16 %v450, %v449
    %v520 = vpack.c.b16 %v452, %v451
    %v521 = vpack.c.b16 %v454, %v453
    %v522 = vpack.c.b16 %v456, %v455
    %v523 = vpack.c.b16 %v458, %v457
    %v524 = vpack.c.b16 %v460, %v459
    %589 = vmatprep.subr.bf16.mxu0 0
    %590 = vmatpush1.bf16.msra.mxu0 %v461
    %591 = vmatprep.subr.bf16.mxu0 0
    %592 = vmatpush1.bf16.msra.mxu0 %v462
    %593 = vmatprep.subr.bf16.mxu0 0
    %594 = vmatpush1.bf16.msra.mxu0 %v463
    %595 = vmatprep.subr.bf16.mxu0 0
    %596 = vmatpush1.bf16.msra.mxu0 %v464
    %597 = vmatprep.subr.bf16.mxu0 0
    %598 = vmatpush1.bf16.msra.mxu0 %v465
    %599 = vmatprep.subr.bf16.mxu0 0
    %600 = vmatpush1.bf16.msra.mxu0 %v466
    %601 = vmatprep.subr.bf16.mxu0 0
    %602 = vmatpush1.bf16.msra.mxu0 %v467
    %603 = vmatprep.subr.bf16.mxu0 0
    %604 = vmatpush1.bf16.msra.mxu0 %v468
    %605 = vmatprep.subr.bf16.mxu0 0
    %606 = vmatpush1.bf16.msra.mxu0 %v469
    %607 = vmatprep.subr.bf16.mxu0 0
    %608 = vmatpush1.bf16.msra.mxu0 %v470
    %609 = vmatprep.subr.bf16.mxu0 0
    %610 = vmatpush1.bf16.msra.mxu0 %v471
    %611 = vmatprep.subr.bf16.mxu0 0
    %612 = vmatpush1.bf16.msra.mxu0 %v472
    %613 = vmatprep.subr.bf16.mxu0 0
    %614 = vmatpush1.bf16.msra.mxu0 %v473
    %615 = vmatprep.subr.bf16.mxu0 0
    %616 = vmatpush1.bf16.msra.mxu0 %v474
    %617 = vmatprep.subr.bf16.mxu0 0
    %618 = vmatpush1.bf16.msra.mxu0 %v475
    %619 = vmatprep.subr.bf16.mxu0 0
    %620 = vmatpush1.bf16.msra.mxu0 %v476
    %621 = vmatprep.mubr.bf16.mxu0 %v190
    %622 = vmatmul.mubr.bf16.gmra.mrb[0].mxu0 %v189
    %v623 = vpop.f32.mrb[0].mxu0
    %v624 = vadd.f32 0.0, %v623
    %v625 = vpop.f32.mrb[0].mxu0
    %v626 = vpop.f32.mrb[0].mxu0
    %v627 = vadd.f32 0.0, %v626
    %v628 = vpop.f32.mrb[0].mxu0
    %629 = vdwg.mxu0
    %630 = vmatprep.subr.bf16.mxu0 0
    %631 = vmatpush1.bf16.msra.mxu0 %v477
    %632 = vmatprep.subr.bf16.mxu0 0
    %633 = vmatpush1.bf16.msra.mxu0 %v478
    %634 = vmatprep.subr.bf16.mxu0 0
    %635 = vmatpush1.bf16.msra.mxu0 %v479
    %636 = vmatprep.subr.bf16.mxu0 0
    %637 = vmatpush1.bf16.msra.mxu0 %v480
    %638 = vmatprep.subr.bf16.mxu0 0
    %639 = vmatpush1.bf16.msra.mxu0 %v481
    %640 = vmatprep.subr.bf16.mxu0 0
    %641 = vmatpush1.bf16.msra.mxu0 %v482
    %642 = vmatprep.subr.bf16.mxu0 0
    %643 = vmatpush1.bf16.msra.mxu0 %v483
    %644 = vmatprep.subr.bf16.mxu0 0
    %645 = vmatpush1.bf16.msra.mxu0 %v484
    %646 = vmatprep.subr.bf16.mxu0 0
    %647 = vmatpush1.bf16.msra.mxu0 %v485
    %648 = vmatprep.subr.bf16.mxu0 0
    %649 = vmatpush1.bf16.msra.mxu0 %v486
    %650 = vmatprep.subr.bf16.mxu0 0
    %651 = vmatpush1.bf16.msra.mxu0 %v487
    %652 = vmatprep.subr.bf16.mxu0 0
    %653 = vmatpush1.bf16.msra.mxu0 %v488
    %654 = vmatprep.subr.bf16.mxu0 0
    %655 = vmatpush1.bf16.msra.mxu0 %v489
    %656 = vmatprep.subr.bf16.mxu0 0
    %657 = vmatpush1.bf16.msra.mxu0 %v490
    %658 = vmatprep.subr.bf16.mxu0 0
    %659 = vmatpush1.bf16.msra.mxu0 %v491
    %660 = vmatprep.subr.bf16.mxu0 0
    %661 = vmatpush1.bf16.msra.mxu0 %v492
    %662 = vmatprep.mubr.bf16.mxu0 %v192
    %663 = vmatmul.mubr.bf16.gmra.mrb[0].mxu0 %v191
    %v664 = vpop.f32.mrb[0].mxu0
    %v665 = vadd.f32 %v624, %v664
    %v666 = vpop.f32.mrb[0].mxu0
    %v667 = vpop.f32.mrb[0].mxu0
    %v668 = vadd.f32 %v627, %v667
    %v669 = vpop.f32.mrb[0].mxu0
    %670 = vdwg.mxu0
    %671 = vmatprep.subr.bf16.mxu0 0
    %672 = vmatpush1.bf16.msra.mxu0 %v493
    %673 = vmatprep.subr.bf16.mxu0 0
    %674 = vmatpush1.bf16.msra.mxu0 %v494
    %675 = vmatprep.subr.bf16.mxu0 0
    %676 = vmatpush1.bf16.msra.mxu0 %v495
    %677 = vmatprep.subr.bf16.mxu0 0
    %678 = vmatpush1.bf16.msra.mxu0 %v496
    %679 = vmatprep.subr.bf16.mxu0 0
    %680 = vmatpush1.bf16.msra.mxu0 %v497
    %681 = vmatprep.subr.bf16.mxu0 0
    %682 = vmatpush1.bf16.msra.mxu0 %v498
    %683 = vmatprep.subr.bf16.mxu0 0
    %684 = vmatpush1.bf16.msra.mxu0 %v499
    %685 = vmatprep.subr.bf16.mxu0 0
    %686 = vmatpush1.bf16.msra.mxu0 %v500
    %687 = vmatprep.subr.bf16.mxu0 0
    %688 = vmatpush1.bf16.msra.mxu0 %v501
    %689 = vmatprep.subr.bf16.mxu0 0
    %690 = vmatpush1.bf16.msra.mxu0 %v502
    %691 = vmatprep.subr.bf16.mxu0 0
    %692 = vmatpush1.bf16.msra.mxu0 %v503
    %693 = vmatprep.subr.bf16.mxu0 0
    %694 = vmatpush1.bf16.msra.mxu0 %v504
    %695 = vmatprep.subr.bf16.mxu0 0
    %696 = vmatpush1.bf16.msra.mxu0 %v505
    %697 = vmatprep.subr.bf16.mxu0 0
    %698 = vmatpush1.bf16.msra.mxu0 %v506
    %699 = vmatprep.subr.bf16.mxu0 0
    %700 = vmatpush1.bf16.msra.mxu0 %v507
    %701 = vmatprep.subr.bf16.mxu0 0
    %702 = vmatpush1.bf16.msra.mxu0 %v508
    %703 = vmatprep.mubr.bf16.mxu0 %v194
    %704 = vmatmul.mubr.bf16.gmra.mrb[0].mxu0 %v193
    %v705 = vpop.f32.mrb[0].mxu0
    %v706 = vadd.f32 %v665, %v705
    %v707 = vpop.f32.mrb[0].mxu0
    %v708 = vpop.f32.mrb[0].mxu0
    %v709 = vadd.f32 %v668, %v708
    %v710 = vpop.f32.mrb[0].mxu0
    %711 = vdwg.mxu0
    %712 = vmatprep.subr.bf16.mxu0 0
    %713 = vmatpush1.bf16.msra.mxu0 %v509
    %714 = vmatprep.subr.bf16.mxu0 0
    %715 = vmatpush1.bf16.msra.mxu0 %v510
    %716 = vmatprep.subr.bf16.mxu0 0
    %717 = vmatpush1.bf16.msra.mxu0 %v511
    %718 = vmatprep.subr.bf16.mxu0 0
    %719 = vmatpush1.bf16.msra.mxu0 %v512
    %720 = vmatprep.subr.bf16.mxu0 0
    %721 = vmatpush1.bf16.msra.mxu0 %v513
    %722 = vmatprep.subr.bf16.mxu0 0
    %723 = vmatpush1.bf16.msra.mxu0 %v514
    %724 = vmatprep.subr.bf16.mxu0 0
    %725 = vmatpush1.bf16.msra.mxu0 %v515
    %726 = vmatprep.subr.bf16.mxu0 0
    %727 = vmatpush1.bf16.msra.mxu0 %v516
    %728 = vmatprep.subr.bf16.mxu0 0
    %729 = vmatpush1.bf16.msra.mxu0 %v517
    %730 = vmatprep.subr.bf16.mxu0 0
    %731 = vmatpush1.bf16.msra.mxu0 %v518
    %732 = vmatprep.subr.bf16.mxu0 0
    %733 = vmatpush1.bf16.msra.mxu0 %v519
    %734 = vmatprep.subr.bf16.mxu0 0
    %735 = vmatpush1.bf16.msra.mxu0 %v520
    %736 = vmatprep.subr.bf16.mxu0 0
    %737 = vmatpush1.bf16.msra.mxu0 %v521
    %738 = vmatprep.subr.bf16.mxu0 0
    %739 = vmatpush1.bf16.msra.mxu0 %v522
    %740 = vmatprep.subr.bf16.mxu0 0
    %741 = vmatpush1.bf16.msra.mxu0 %v523
    %742 = vmatprep.subr.bf16.mxu0 0
    %743 = vmatpush1.bf16.msra.mxu0 %v524
    %744 = vmatprep.mubr.bf16.mxu0 %v196
    %745 = vmatmul.mubr.bf16.gmra.mrb[0].mxu0 %v195
    %v746 = vpop.f32.mrb[0].mxu0
    %v747 = vadd.f32 %v706, %v746
    %v748 = vpop.f32.mrb[0].mxu0
    %v749 = vpop.f32.mrb[0].mxu0
    %v750 = vadd.f32 %v709, %v749
    %v751 = vpop.f32.mrb[0].mxu0
    %752 = vdwg.mxu0
    %p753 = scmp.eq.s32.totalorder 0, 0
    // Predicated region
    $region18: #{forward.1} parent=1 // pred_check
      %p754 = pneg %p753
    $region19: #{forward.1} parent=1 // pred_check_branch
      %756 = sbr.rel (%p754) target = $region21
    $region20: #{forward.1} parent=1 // pred_region
      %v757 = vld [vmem:[%s2] sm:$0x1]
      %v759 = vlaneseq
      %v760 = vshrl.u32 %v759, 7
      %v761 = vsub.s32 0, %v760
      %v762 = vrot.slane %v757, %v761
      %v764 = vadd.f32 %v747, %v762
      %v765 = vadd.f32 %v750, %v762
      %766 = vst [vmem:[%s3] sm:$0xff] %v764
      %767 = vst [vmem:[%s3 + $0x8] sm:$0xff] %v765
    $region21: #{forward.1} parent=1 // pred_fallthru
      _
    %p768 = scmp.ne.s32.totalorder 0, 0
    // Predicated region
    $region22: #{forward.1} parent=1 // pred_check
      %p769 = pneg %p768
    $region23: #{forward.1} parent=1 // pred_check_branch
      %771 = sbr.rel (%p769) target = $region25
    $region24: #{forward.1} parent=1 // pred_region
      %v772 = vld [vmem:[%s3] sm:$0xff]
      %v773 = vld [vmem:[%s3 + $0x8] sm:$0xff]
      %v774 = vadd.f32 %v772, %v747
      %v775 = vadd.f32 %v773, %v750
      %776 = vst [vmem:[%s3] sm:$0xff] %v774
      %777 = vst [vmem:[%s3 + $0x8] sm:$0xff] %v775
    $region25: #{forward.1} parent=1 // pred_fallthru
      _
    // Predicated region
    $region26: #{forward.1} parent=1 // pred_check
      _
    $region27: #{forward.1} parent=1 // pred_check_branch
      %779 = sbr.rel (0) target = $region29
    $region28: #{forward.1} parent=1 // pred_region
      _
    $region29: #{forward.1} parent=1 // pred_fallthru
      _
    // Predicated region
    $region30: #{forward.1} parent=1 // pred_check
      _
    $region31: #{forward.1} parent=1 // pred_check_branch
      %781 = sbr.rel (0) target = $region33
    $region32: #{forward.1} parent=1 // pred_region
      _
    $region33: #{forward.1} parent=1 // pred_fallthru
      _
    %782 = vsyncpa [#allocation3], 1

</llo_original>
